<compile_context>
chip_gen: v6e
topology: v6e:2x2x1
jax: 0.10.0
libtpu: 0.0.40
codegen_flags: <defaults>
</compile_context>

<pallas_src>
import functools

import jax
import jax.numpy as jnp
from jax.experimental import pallas as pl
from jax.experimental.pallas import tpu as pltpu

PAD = 128  # lane-dense width for fused activations / logits / outputs


def rnn_seq_kernel(
    cat_ref, inp_ref, hid0_ref,
    w1c_ref, w1i_ref, w1h_ref, b1_ref, w2_ref, b2_ref,
    out_ref, hidf_ref,
    state_ref, catc_ref,
):
    t = pl.program_id(0)
    n_steps = pl.num_programs(0)

    @pl.when(t == 0)
    def _init():
        # Category is constant over the sequence: its layer-1 contribution
        # (plus the fused layer-1 bias) is computed once and cached.
        catc_ref[...] = (
            jnp.dot(cat_ref[...], w1c_ref[...], preferred_element_type=jnp.float32)
            + b1_ref[...]
        )
        # Recurrent state is carried as a lane-dense (B, 128) slab; lanes past
        # hidden_size are multiplied by zero rows of w1_h so they never matter.
        state_ref[...] = hid0_ref[...]

    inp = inp_ref[0]  # (B, input_size)

    # Fused layer 1: columns [0:hid) = i2h(x), [hid:hid+out) = i2o(x), rest 0.
    pre = (
        catc_ref[...]
        + jnp.dot(inp, w1i_ref[...], preferred_element_type=jnp.float32)
        + jnp.dot(state_ref[...], w1h_ref[...], preferred_element_type=jnp.float32)
    )

    # o2o(cat([hidden_new, output], 1)): `pre` is already in that layout and
    # w2 has zero rows for the padded lanes, so this is a single matmul.
    logits = (
        jnp.dot(pre, w2_ref[...], preferred_element_type=jnp.float32) + b2_ref[...]
    )

    # TODO(synk): nn.Dropout(0.1) is stochastic; applied as identity (eval mode).

    # log_softmax over the padded lane axis; padded logits sit at ~-1e30 (from
    # b2) so they contribute nothing to the max / sum.
    m = jnp.max(logits, axis=1, keepdims=True)
    z = logits - m
    lse = jnp.log(jnp.sum(jnp.exp(z), axis=1, keepdims=True))
    out_ref[0] = (z - lse).astype(out_ref.dtype)

    # Recurrent carry: hidden_new lives in lanes [0:hid) of `pre`.
    state_ref[...] = pre

    @pl.when(t == n_steps - 1)
    def _final():
        hidf_ref[...] = pre.astype(hidf_ref.dtype)


def prepare_params(params, n_cat, in_sz, hid_sz, out_sz, pad=PAD):
    """One-time packing of the three Linear layers into lane-dense slabs.

    Layer 1 fuses i2h and i2o column-wise so that
        x @ W1 = [ i2h(x) | i2o(x) | zeros ]
    which is exactly the (zero-padded) layout o2o expects as input.
    Done once at model-prep time; the per-call path touches no weights.
    """
    assert n_cat > 0, "zero-width category (tutorial import-time corner) unsupported"
    assert hid_sz + out_sz <= pad and out_sz <= pad

    w_i2h = jnp.asarray(params["i2h_w"], jnp.float32).T  # (n_cat+in+hid, hid)
    w_i2o = jnp.asarray(params["i2o_w"], jnp.float32).T  # (n_cat+in+hid, out)
    w_o2o = jnp.asarray(params["o2o_w"], jnp.float32).T  # (hid+out, out)

    def fuse(lo, hi):
        w = jnp.zeros((hi - lo, pad), jnp.float32)
        w = w.at[:, :hid_sz].set(w_i2h[lo:hi])
        w = w.at[:, hid_sz:hid_sz + out_sz].set(w_i2o[lo:hi])
        return w

    w1_c = fuse(0, n_cat)                                     # (n_cat, pad)
    w1_i = fuse(n_cat, n_cat + in_sz)                         # (in,    pad)
    w1_h = jnp.zeros((pad, pad), jnp.float32).at[:hid_sz].set(
        fuse(n_cat + in_sz, n_cat + in_sz + hid_sz))          # (pad,   pad)

    b1 = jnp.zeros((1, pad), jnp.float32)
    b1 = b1.at[0, :hid_sz].set(jnp.asarray(params["i2h_b"], jnp.float32))
    b1 = b1.at[0, hid_sz:hid_sz + out_sz].set(jnp.asarray(params["i2o_b"], jnp.float32))

    w2 = jnp.zeros((pad, pad), jnp.float32).at[:hid_sz + out_sz, :out_sz].set(w_o2o)

    # Padded logit lanes get a huge negative bias so log_softmax ignores them.
    b2 = jnp.full((1, pad), -1e30, jnp.float32)
    b2 = b2.at[0, :out_sz].set(jnp.asarray(params["o2o_b"], jnp.float32))

    return {
        "w1_c": w1_c, "w1_i": w1_i, "w1_h": w1_h, "b1": b1, "w2": w2, "b2": b2,
        "out_sz": out_sz, "hid_sz": hid_sz,
    }


@functools.partial(jax.jit, static_argnames=("out_sz",))
def _rnn_forward_impl(category, inputs_seq, hidden0,
                      w1_c, w1_i, w1_h, b1, w2, b2, *, out_sz):
    T, B, in_sz = inputs_seq.shape
    n_cat = category.shape[1]
    hid_sz = hidden0.shape[1]

    # Lane-pad the initial hidden once per sequence (tiny, outside the kernel).
    hidden0_pad = jnp.zeros((B, PAD), jnp.float32).at[:, :hid_sz].set(hidden0)

    grid_spec = pltpu.PrefetchScalarGridSpec(
        num_scalar_prefetch=0,
        grid=(T,),
        in_specs=[
            pl.BlockSpec((B, n_cat), lambda t: (0, 0)),        # category (const)
            pl.BlockSpec((1, B, in_sz), lambda t: (t, 0, 0)),  # per-step input
            pl.BlockSpec((B, PAD), lambda t: (0, 0)),          # padded hidden0
            pl.BlockSpec((n_cat, PAD), lambda t: (0, 0)),      # fused W1_cat
            pl.BlockSpec((in_sz, PAD), lambda t: (0, 0)),      # fused W1_in
            pl.BlockSpec((PAD, PAD), lambda t: (0, 0)),        # fused W1_hid
            pl.BlockSpec((1, PAD), lambda t: (0, 0)),          # fused b1
            pl.BlockSpec((PAD, PAD), lambda t: (0, 0)),        # o2o weight
            pl.BlockSpec((1, PAD), lambda t: (0, 0)),          # o2o bias (+mask)
        ],
        out_specs=[
            pl.BlockSpec((1, B, PAD), lambda t: (t, 0, 0)),    # per-step logprobs
            pl.BlockSpec((B, PAD), lambda t: (0, 0)),          # final hidden
        ],
        scratch_shapes=[
            pltpu.VMEM((B, PAD), jnp.float32),  # recurrent state (fused `pre`)
            pltpu.VMEM((B, PAD), jnp.float32),  # cached category contribution
        ],
    )

    out_pad, hid_pad = pl.pallas_call(
        rnn_seq_kernel,
        out_shape=(
            jax.ShapeDtypeStruct((T, B, PAD), jnp.float32),
            jax.ShapeDtypeStruct((B, PAD), jnp.float32),
        ),
        grid_spec=grid_spec,
        compiler_params=pltpu.CompilerParams(
            dimension_semantics=("arbitrary",)),
    )(category, inputs_seq, hidden0_pad,
      w1_c, w1_i, w1_h, b1, w2, b2)

    return out_pad[:, :, :out_sz], hid_pad[:, :hid_sz]


def rnn_forward_seq(category, inputs_seq, hidden0, packed):
    """Run T steps of the RNN forward in one kernel.

    category:   (B, n_categories)  — constant over the sequence (as in tutorial)
    inputs_seq: (T, B, input_size)
    hidden0:    (B, hidden_size)
    Returns (log_probs (T, B, output_size), final_hidden (B, hidden_size)).
    """
    return _rnn_forward_impl(
        category, inputs_seq, hidden0,
        packed["w1_c"], packed["w1_i"], packed["w1_h"],
        packed["b1"], packed["w2"], packed["b2"],
        out_sz=packed["out_sz"])


def _reference_seq(category, inputs_seq, hidden0, params):
    """Pure-JAX reference mirroring the PyTorch per-step forward (eval mode)."""
    T = inputs_seq.shape[0]
    hidden = hidden0
    outs = []
    for t in range(T):
        x = jnp.concatenate((category, inputs_seq[t], hidden), axis=1)
        hidden = x @ params["i2h_w"].T + params["i2h_b"]
        output = x @ params["i2o_w"].T + params["i2o_b"]
        oc = jnp.concatenate((hidden, output), axis=1)
        output = oc @ params["o2o_w"].T + params["o2o_b"]
        outs.append(jax.nn.log_softmax(output, axis=1))
    return jnp.stack(outs), hidden


if __name__ == "__main__":
    # NOTE: the tutorial script has n_categories == 0 at import time, which is
    # a degenerate zero-width tensor; we use a small nonzero category count.
    n_categories = 4
    input_size = 8
    hidden_size = 32
    output_size = 8
    batch = 8      # fill all 8 vreg sublanes / MXU rows
    seq_len = 8

    key = jax.random.PRNGKey(0)
    ks = jax.random.split(key, 10)

    combined = n_categories + input_size + hidden_size
    params = {
        "i2h_w": jax.random.normal(ks[0], (hidden_size, combined), jnp.float32) * 0.1,
        "i2h_b": jax.random.normal(ks[1], (hidden_size,), jnp.float32) * 0.1,
        "i2o_w": jax.random.normal(ks[2], (output_size, combined), jnp.float32) * 0.1,
        "i2o_b": jax.random.normal(ks[3], (output_size,), jnp.float32) * 0.1,
        "o2o_w": jax.random.normal(
            ks[4], (output_size, hidden_size + output_size), jnp.float32) * 0.1,
        "o2o_b": jax.random.normal(ks[5], (output_size,), jnp.float32) * 0.1,
    }

    category = jax.random.normal(ks[6], (batch, n_categories), jnp.float32)
    inputs_seq = jax.random.normal(ks[7], (seq_len, batch, input_size), jnp.float32)
    hidden0 = jax.random.normal(ks[8], (batch, hidden_size), jnp.float32) * 0.1

    # One-time weight packing (done at "model init", not per call).
    packed = prepare_params(params, n_categories, input_size, hidden_size, output_size)

    out_seq, hid_final = rnn_forward_seq(category, inputs_seq, hidden0, packed)
    jax.block_until_ready((out_seq, hid_final))

    ref_out, ref_hid = _reference_seq(category, inputs_seq, hidden0, params)
    assert out_seq.shape == ref_out.shape and hid_final.shape == ref_hid.shape
    assert jnp.allclose(out_seq, ref_out, atol=1e-4, rtol=1e-4), "output mismatch"
    assert jnp.allclose(hid_final, ref_hid, atol=1e-4, rtol=1e-4), "hidden mismatch"

    print("KERNEL_OK")
</pallas_src>

<mosaic_0001>
module attributes {stable_mosaic.version = 11 : i64} {
  func.func @rnn_seq_kernel(%arg0: i32, %arg1: memref<8x4xf32, #tpu.memory_space<vmem>>, %arg2: memref<1x8x8xf32, #tpu.memory_space<vmem>>, %arg3: memref<8x128xf32, #tpu.memory_space<vmem>>, %arg4: memref<4x128xf32, #tpu.memory_space<vmem>>, %arg5: memref<8x128xf32, #tpu.memory_space<vmem>>, %arg6: memref<128x128xf32, #tpu.memory_space<vmem>>, %arg7: memref<1x128xf32, #tpu.memory_space<vmem>>, %arg8: memref<128x128xf32, #tpu.memory_space<vmem>>, %arg9: memref<1x128xf32, #tpu.memory_space<vmem>>, %arg10: memref<1x8x128xf32, #tpu.memory_space<vmem>>, %arg11: memref<8x128xf32, #tpu.memory_space<vmem>>, %arg12: memref<8x128xf32, #tpu.memory_space<vmem>>, %arg13: memref<8x128xf32, #tpu.memory_space<vmem>>) attributes {dimension_semantics = [#tpu.dimension_semantics<arbitrary>], iteration_bounds = array<i64: 8>, scalar_prefetch = 0 : i64, scratch_operands = 2 : i64, tpu.core_type = #tpu.core_type<tc>, window_params = [{pipeline_mode = #tpu.pipeline_mode<synchronous>, transform_indices = @transform_0, window_bounds = array<i64: 8, 4>}, {transform_indices = @transform_1, window_bounds = array<i64: 1, 8, 8>}, {pipeline_mode = #tpu.pipeline_mode<synchronous>, transform_indices = @transform_2, window_bounds = array<i64: 8, 128>}, {pipeline_mode = #tpu.pipeline_mode<synchronous>, transform_indices = @transform_3, window_bounds = array<i64: 4, 128>}, {pipeline_mode = #tpu.pipeline_mode<synchronous>, transform_indices = @transform_4, window_bounds = array<i64: 8, 128>}, {pipeline_mode = #tpu.pipeline_mode<synchronous>, transform_indices = @transform_5, window_bounds = array<i64: 128, 128>}, {pipeline_mode = #tpu.pipeline_mode<synchronous>, transform_indices = @transform_6, window_bounds = array<i64: 1, 128>}, {pipeline_mode = #tpu.pipeline_mode<synchronous>, transform_indices = @transform_7, window_bounds = array<i64: 128, 128>}, {pipeline_mode = #tpu.pipeline_mode<synchronous>, transform_indices = @transform_8, window_bounds = array<i64: 1, 128>}, {transform_indices = @transform_9, window_bounds = array<i64: 1, 8, 128>}, {pipeline_mode = #tpu.pipeline_mode<synchronous>, transform_indices = @transform_10, window_bounds = array<i64: 8, 128>}]} {
    %c0_i32 = arith.constant 0 : i32
    %0 = arith.cmpi eq, %arg0, %c0_i32 : i32
    %1 = arith.extui %0 : i1 to i32
    %c0_i32_0 = arith.constant 0 : i32
    %2 = arith.cmpi ne, %1, %c0_i32_0 : i32
    scf.if %2 {
      %c0_25 = arith.constant 0 : index
      %c0_26 = arith.constant 0 : index
      %35 = vector.load %arg1[%c0_25, %c0_26] : memref<8x4xf32, #tpu.memory_space<vmem>>, vector<8x4xf32>
      %c0_27 = arith.constant 0 : index
      %c0_28 = arith.constant 0 : index
      %36 = vector.load %arg4[%c0_27, %c0_28] : memref<4x128xf32, #tpu.memory_space<vmem>>, vector<4x128xf32>
      %cst_29 = arith.constant dense<0.000000e+00> : vector<8x128xf32>
      %37 = tpu.matmul %35, %36, %cst_29 {dimension_numbers = #tpu.dot_dimension_numbers<[1], [0], [0], [1], [0, 0, 1, 1], [], []>} : vector<8x4xf32>, vector<4x128xf32>, vector<8x128xf32> -> vector<8x128xf32>
      %c0_30 = arith.constant 0 : index
      %c0_31 = arith.constant 0 : index
      %38 = vector.load %arg7[%c0_30, %c0_31] : memref<1x128xf32, #tpu.memory_space<vmem>>, vector<1x128xf32>
      %39 = vector.broadcast %38 : vector<1x128xf32> to vector<8x128xf32>
      %40 = arith.addf %37, %39 : vector<8x128xf32>
      %c0_32 = arith.constant 0 : index
      %c0_33 = arith.constant 0 : index
      %41 = vector.load %arg13[%c0_32, %c0_33] : memref<8x128xf32, #tpu.memory_space<vmem>>, vector<8x128xf32>
      tpu.vector_store %arg13[%c0_32, %c0_33], %40 {strides = array<i32>} : memref<8x128xf32, #tpu.memory_space<vmem>>, vector<8x128xf32>,
      %c0_34 = arith.constant 0 : index
      %c0_35 = arith.constant 0 : index
      %42 = vector.load %arg3[%c0_34, %c0_35] : memref<8x128xf32, #tpu.memory_space<vmem>>, vector<8x128xf32>
      %c0_36 = arith.constant 0 : index
      %c0_37 = arith.constant 0 : index
      %43 = vector.load %arg12[%c0_36, %c0_37] : memref<8x128xf32, #tpu.memory_space<vmem>>, vector<8x128xf32>
      tpu.vector_store %arg12[%c0_36, %c0_37], %42 {strides = array<i32>} : memref<8x128xf32, #tpu.memory_space<vmem>>, vector<8x128xf32>,
    } else {
    }
    %c0 = arith.constant 0 : index
    %c0_1 = arith.constant 0 : index
    %c0_2 = arith.constant 0 : index
    %3 = vector.load %arg2[%c0, %c0_1, %c0_2] : memref<1x8x8xf32, #tpu.memory_space<vmem>>, vector<1x8x8xf32>
    %4 = vector.shape_cast %3 : vector<1x8x8xf32> to vector<8x8xf32>
    %c0_3 = arith.constant 0 : index
    %c0_4 = arith.constant 0 : index
    %5 = vector.load %arg13[%c0_3, %c0_4] : memref<8x128xf32, #tpu.memory_space<vmem>>, vector<8x128xf32>
    %c0_5 = arith.constant 0 : index
    %c0_6 = arith.constant 0 : index
    %6 = vector.load %arg5[%c0_5, %c0_6] : memref<8x128xf32, #tpu.memory_space<vmem>>, vector<8x128xf32>
    %cst = arith.constant dense<0.000000e+00> : vector<8x128xf32>
    %7 = tpu.matmul %4, %6, %cst {dimension_numbers = #tpu.dot_dimension_numbers<[1], [0], [0], [1], [0, 0, 1, 1], [], []>} : vector<8x8xf32>, vector<8x128xf32>, vector<8x128xf32> -> vector<8x128xf32>
    %8 = arith.addf %5, %7 : vector<8x128xf32>
    %c0_7 = arith.constant 0 : index
    %c0_8 = arith.constant 0 : index
    %9 = vector.load %arg12[%c0_7, %c0_8] : memref<8x128xf32, #tpu.memory_space<vmem>>, vector<8x128xf32>
    %c0_9 = arith.constant 0 : index
    %c0_10 = arith.constant 0 : index
    %10 = vector.load %arg6[%c0_9, %c0_10] : memref<128x128xf32, #tpu.memory_space<vmem>>, vector<128x128xf32>
    %cst_11 = arith.constant dense<0.000000e+00> : vector<8x128xf32>
    %11 = tpu.matmul %9, %10, %cst_11 {dimension_numbers = #tpu.dot_dimension_numbers<[1], [0], [0], [1], [0, 0, 1, 1], [], []>} : vector<8x128xf32>, vector<128x128xf32>, vector<8x128xf32> -> vector<8x128xf32>
    %12 = arith.addf %8, %11 : vector<8x128xf32>
    %c0_12 = arith.constant 0 : index
    %c0_13 = arith.constant 0 : index
    %13 = vector.load %arg8[%c0_12, %c0_13] : memref<128x128xf32, #tpu.memory_space<vmem>>, vector<128x128xf32>
    %cst_14 = arith.constant dense<0.000000e+00> : vector<8x128xf32>
    %14 = tpu.matmul %12, %13, %cst_14 {dimension_numbers = #tpu.dot_dimension_numbers<[1], [0], [0], [1], [0, 0, 1, 1], [], []>} : vector<8x128xf32>, vector<128x128xf32>, vector<8x128xf32> -> vector<8x128xf32>
    %c0_15 = arith.constant 0 : index
    %c0_16 = arith.constant 0 : index
    %15 = vector.load %arg9[%c0_15, %c0_16] : memref<1x128xf32, #tpu.memory_space<vmem>>, vector<1x128xf32>
    %16 = vector.broadcast %15 : vector<1x128xf32> to vector<8x128xf32>
    %17 = arith.addf %14, %16 : vector<8x128xf32>
    %cst_17 = arith.constant dense<0xFF800000> : vector<8xf32>
    %18 = vector.multi_reduction <maximumf>, %17, %cst_17 [1] : vector<8x128xf32> to vector<8xf32>
    %19 = vector.shape_cast %18 : vector<8xf32> to vector<8x1xf32>
    %20 = vector.broadcast %19 : vector<8x1xf32> to vector<8x128xf32>
    %21 = arith.subf %17, %20 : vector<8x128xf32>
    %22 = math.exp %21 : vector<8x128xf32>
    %cst_18 = arith.constant dense<0.000000e+00> : vector<8xf32>
    %23 = vector.multi_reduction <add>, %22, %cst_18 [1] : vector<8x128xf32> to vector<8xf32>
    %24 = vector.shape_cast %23 : vector<8xf32> to vector<8x1xf32>
    %25 = math.log %24 : vector<8x1xf32>
    %26 = vector.broadcast %25 : vector<8x1xf32> to vector<8x128xf32>
    %27 = arith.subf %21, %26 : vector<8x128xf32>
    %c0_19 = arith.constant 0 : index
    %c0_20 = arith.constant 0 : index
    %c0_21 = arith.constant 0 : index
    %28 = vector.load %arg10[%c0_19, %c0_20, %c0_21] : memref<1x8x128xf32, #tpu.memory_space<vmem>>, vector<1x8x128xf32>
    %29 = vector.shape_cast %28 : vector<1x8x128xf32> to vector<8x128xf32>
    %30 = vector.shape_cast %27 : vector<8x128xf32> to vector<1x8x128xf32>
    tpu.vector_store %arg10[%c0_19, %c0_20, %c0_21], %30 {strides = array<i32>} : memref<1x8x128xf32, #tpu.memory_space<vmem>>, vector<1x8x128xf32>,
    %c0_22 = arith.constant 0 : index
    %c0_23 = arith.constant 0 : index
    %31 = vector.load %arg12[%c0_22, %c0_23] : memref<8x128xf32, #tpu.memory_space<vmem>>, vector<8x128xf32>
    tpu.vector_store %arg12[%c0_22, %c0_23], %12 {strides = array<i32>} : memref<8x128xf32, #tpu.memory_space<vmem>>, vector<8x128xf32>,
    %c7_i32 = arith.constant 7 : i32
    %32 = arith.cmpi eq, %arg0, %c7_i32 : i32
    %33 = arith.extui %32 : i1 to i32
    %c0_i32_24 = arith.constant 0 : i32
    %34 = arith.cmpi ne, %33, %c0_i32_24 : i32
    scf.if %34 {
      %c0_25 = arith.constant 0 : index
      %c0_26 = arith.constant 0 : index
      %35 = vector.load %arg11[%c0_25, %c0_26] : memref<8x128xf32, #tpu.memory_space<vmem>>, vector<8x128xf32>
      tpu.vector_store %arg11[%c0_25, %c0_26], %12 {strides = array<i32>} : memref<8x128xf32, #tpu.memory_space<vmem>>, vector<8x128xf32>,
    } else {
    }
    return
  }
  func.func @transform_0(%arg0: i32) -> (i32, i32) {
    %c0_i32 = arith.constant 0 : i32
    %c0_i32_0 = arith.constant 0 : i32
    %c0_i32_1 = arith.constant 0 : i32
    return %c0_i32, %c0_i32_0 : i32, i32
  }
  func.func @transform_1(%arg0: i32) -> (i32, i32, i32) {
    %c0_i32 = arith.constant 0 : i32
    %c0_i32_0 = arith.constant 0 : i32
    %c0_i32_1 = arith.constant 0 : i32
    return %arg0, %c0_i32, %c0_i32_0 : i32, i32, i32
  }
  func.func @transform_2(%arg0: i32) -> (i32, i32) {
    %c0_i32 = arith.constant 0 : i32
    %c0_i32_0 = arith.constant 0 : i32
    %c0_i32_1 = arith.constant 0 : i32
    return %c0_i32, %c0_i32_0 : i32, i32
  }
  func.func @transform_3(%arg0: i32) -> (i32, i32) {
    %c0_i32 = arith.constant 0 : i32
    %c0_i32_0 = arith.constant 0 : i32
    %c0_i32_1 = arith.constant 0 : i32
    return %c0_i32, %c0_i32_0 : i32, i32
  }
  func.func @transform_4(%arg0: i32) -> (i32, i32) {
    %c0_i32 = arith.constant 0 : i32
    %c0_i32_0 = arith.constant 0 : i32
    %c0_i32_1 = arith.constant 0 : i32
    return %c0_i32, %c0_i32_0 : i32, i32
  }
  func.func @transform_5(%arg0: i32) -> (i32, i32) {
    %c0_i32 = arith.constant 0 : i32
    %c0_i32_0 = arith.constant 0 : i32
    %c0_i32_1 = arith.constant 0 : i32
    return %c0_i32, %c0_i32_0 : i32, i32
  }
  func.func @transform_6(%arg0: i32) -> (i32, i32) {
    %c0_i32 = arith.constant 0 : i32
    %c0_i32_0 = arith.constant 0 : i32
    %c0_i32_1 = arith.constant 0 : i32
    return %c0_i32, %c0_i32_0 : i32, i32
  }
  func.func @transform_7(%arg0: i32) -> (i32, i32) {
    %c0_i32 = arith.constant 0 : i32
    %c0_i32_0 = arith.constant 0 : i32
    %c0_i32_1 = arith.constant 0 : i32
    return %c0_i32, %c0_i32_0 : i32, i32
  }
  func.func @transform_8(%arg0: i32) -> (i32, i32) {
    %c0_i32 = arith.constant 0 : i32
    %c0_i32_0 = arith.constant 0 : i32
    %c0_i32_1 = arith.constant 0 : i32
    return %c0_i32, %c0_i32_0 : i32, i32
  }
  func.func @transform_9(%arg0: i32) -> (i32, i32, i32) {
    %c0_i32 = arith.constant 0 : i32
    %c0_i32_0 = arith.constant 0 : i32
    %c0_i32_1 = arith.constant 0 : i32
    return %arg0, %c0_i32, %c0_i32_0 : i32, i32, i32
  }
  func.func @transform_10(%arg0: i32) -> (i32, i32) {
    %c0_i32 = arith.constant 0 : i32
    %c0_i32_0 = arith.constant 0 : i32
    %c0_i32_1 = arith.constant 0 : i32
    return %c0_i32, %c0_i32_0 : i32, i32
  }
}

</mosaic_0001>

<llo_original>
// kernel: _rnn_forward_impl.1
$region0: #{_rnn_forward_impl.1}
  #allocation0 [shape = 'u32[]', space=smem, size = 0x4, offset = 0x4, fixed_abs, tag = 'smem constant byte address 0x4 - core index']
  #allocation1 [shape = 'u32[144,128]{1,0:T(1,128)}', space=vmem, size = 0x12000, scoped, tag = 'internal scratch']
  #allocation2 [shape = 'f32[8,128]{1,0:T(8,128)}', space=vmem, size = 0x1000, scoped, tag = 'scratch operand']
  #allocation3 [shape = 'f32[8,128]{1,0:T(8,128)}', space=vmem, size = 0x1000, scoped, tag = 'scratch operand']
  %s0 = inlined_call_operand.vmem [shape: f32[8,4], index: 0, kind: input, shape index: {}]
  %s1 = inlined_call_operand.hbm [shape: f32[8,8,8], index: 1, kind: input, shape index: {}]
  %s2 = inlined_call_operand.vmem [shape: f32[8,128], index: 2, kind: input, shape index: {}]
  %s3 = inlined_call_operand.vmem [shape: f32[4,128], index: 3, kind: input, shape index: {}]
  %s4 = inlined_call_operand.vmem [shape: f32[8,128], index: 4, kind: input, shape index: {}]
  %s5 = inlined_call_operand.hbm [shape: f32[128,128], index: 5, kind: input, shape index: {}]
  %s6 = inlined_call_operand.vmem [shape: f32[1,128], index: 6, kind: input, shape index: {}]
  %s7 = inlined_call_operand.hbm [shape: f32[128,128], index: 7, kind: input, shape index: {}]
  %s8 = inlined_call_operand.vmem [shape: f32[1,128], index: 8, kind: input, shape index: {}]
  %s9 = inlined_call_operand.hbm [shape: f32[8,8,128], index: 9, kind: output, shape index: {0}]
  %s10 = inlined_call_operand.hbm [shape: f32[8,128], index: 10, kind: output, shape index: {1}]
  %11 = xla_tuple %s9, %s10
  %s12 = sld [smem:[#allocation0]]
  $region97: #{_rnn_forward_impl.1} parent=0
    _
  %s14 = ssub.s32 1, %s12
  %s15 = scalar_select 0, %s14, %s12
  $region1: #{_rnn_forward_impl.1} parent=0
    #allocation4 [shape = 'u8[8192]{0}', space=vmem, size = 0x2000, scoped, tag = 'input window, operand 1']
    #allocation5 [shape = 's32[2]{0}', space=sflag, size = 0x8, scoped, tag = 'scoped memory for _rnn_forward_impl.1']
    #allocation6 [shape = 's32[2]{0}', space=sflag, size = 0x8, scoped, tag = 'scoped memory for _rnn_forward_impl.1']
    #allocation7 [shape = 'u8[65536]{0}', space=vmem, size = 0x10000, scoped, tag = 'input window, operand 5, single buffered']
    #allocation8 [shape = 's32[1]{0}', space=sflag, size = 0x4, scoped, tag = 'scoped memory for _rnn_forward_impl.1']
    #allocation9 [shape = 'u8[65536]{0}', space=vmem, size = 0x10000, scoped, tag = 'input window, operand 7, single buffered']
    #allocation10 [shape = 'u8[8192]{0}', space=vmem, size = 0x2000, scoped, tag = 'output window, operand 0']
    #allocation11 [shape = 'u8[4096]{0}', space=vmem, size = 0x1000, scoped, tag = 'output window, operand 1, single buffered']
    #allocation12 [shape = 's32[1]{0}', space=sflag, size = 0x4, scoped, tag = 'scoped memory for _rnn_forward_impl.1']
    %16 = vsyncpa [#allocation5], 0
    %s17 = scalar_lea.sflag [#allocation5], 1
    %18 = vsyncpa %s17, 0
    %19 = vsyncpa [#allocation8], 0
    %20 = vsyncpa [#allocation6], 0
    %s21 = scalar_lea.sflag [#allocation6], 1
    %22 = vsyncpa %s21, 0
    %23 = vsyncpa [#allocation12], 0
    loop: start=0, step=1, limit=10
    $region2: #{_rnn_forward_impl.1} parent=1 // loop_pre_header
      _
    $region3: #{_rnn_forward_impl.1} parent=1 // loop_header
      %s25 = sphi 0, %s29
      %p26 = scmp.ge.s32.totalorder %s25, 10
      %s33 = sphi 0, %s33
      %s35 = sphi 0, %s33
      %s36 = sphi 0, %s35
      %s50 = sphi 0, %s36
      %s56 = sphi 0, %s58
      %s59 = sphi 0, %s56
      %s60 = sphi 0, %s59
      %s76 = sphi 0, %s60
      %s80 = sphi 0, %s80
      %s82 = sphi 0, %s80
      %s83 = sphi 0, %s82
      %s97 = sphi 0, %s83
      %s101 = sphi 0, %s101
      %s103 = sphi 0, %s101
      %s104 = sphi 0, %s103
      %s118 = sphi 0, %s104
      %s122 = sphi 0, %s122
      %s124 = sphi 0, %s122
      %s125 = sphi 0, %s124
      %s139 = sphi 0, %s125
      %s143 = sphi 0, %s143
      %s145 = sphi 0, %s143
      %s146 = sphi 0, %s145
      %s160 = sphi 0, %s146
      %s164 = sphi 0, %s164
      %s166 = sphi 0, %s164
      %s167 = sphi 0, %s166
      %s181 = sphi 0, %s167
      %s185 = sphi 0, %s185
      %s187 = sphi 0, %s185
      %s188 = sphi 0, %s187
      %s202 = sphi 0, %s188
      %s206 = sphi 0, %s206
      %s208 = sphi 0, %s206
      %s209 = sphi 0, %s208
      %s223 = sphi 0, %s209
      %s229 = sphi 0, %s231
      %s232 = sphi 0, %s229
      %s233 = sphi 0, %s232
      %s249 = sphi 0, %s233
      %s253 = sphi 0, %s253
      %s255 = sphi 0, %s253
      %s256 = sphi 0, %s255
      %s270 = sphi 0, %s256
    $region4: #{_rnn_forward_impl.1} parent=1 // loop_header_branch
      %28 = sbr.rel (%p26) target = $region8
    $region5: #{_rnn_forward_impl.1} parent=1 // loop_body
      %s30 = ssub.s32 %s25, 1
      %s31 = ssub.s32 %s25, 2
      %s32 = sadd.s32 %s25, 1
      %s34 = sadd.s32 %s33, 1
      %p37 = scmp.eq.s32.totalorder %s25, 7
      %p38 = scmp.ne.s32.totalorder %s33, %s35
      %p39 = scmp.eq.s32.totalorder %s25, 0
      %p40 = por %p38, %p39
      %p41 = scmp.ne.s32.totalorder %s33, %s35
      %p42 = scmp.eq.s32.totalorder %s30, 7
      %p43 = por %p41, %p42
      %p44 = scmp.ne.s32.totalorder %s35, %s36
      %p45 = scmp.eq.s32.totalorder %s30, 0
      %p46 = por %p44, %p45
      %p47 = scmp.ne.s32.totalorder %s35, %s36
      %p48 = scmp.eq.s32.totalorder %s31, 7
      %p49 = por %p47, %p48
      %p51 = scmp.ne.s32.totalorder %s36, %s50
      %p52 = scmp.eq.s32.totalorder %s31, 0
      %p53 = por %p51, %p52
      %s54 = ssub.s32 %s25, %s32
      %p55 = scmp.eq.s32.totalorder %s54, 0
      %s57 = sadd.s32 %s56, 1
      %s58 = scalar_select %p55, %s56, %s57
      %p61 = pneg %p55
      %p62 = scmp.eq.s32.totalorder %s25, 7
      %p63 = por %p61, %p62
      %p64 = scmp.ne.s32.totalorder %s56, %s59
      %p65 = scmp.eq.s32.totalorder %s25, 0
      %p66 = por %p64, %p65
      %p67 = scmp.ne.s32.totalorder %s56, %s59
      %p68 = scmp.eq.s32.totalorder %s30, 7
      %p69 = por %p67, %p68
      %p70 = scmp.ne.s32.totalorder %s59, %s60
      %p71 = scmp.eq.s32.totalorder %s30, 0
      %p72 = por %p70, %p71
      %p73 = scmp.ne.s32.totalorder %s59, %s60
      %p74 = scmp.eq.s32.totalorder %s31, 7
      %p75 = por %p73, %p74
      %p77 = scmp.ne.s32.totalorder %s60, %s76
      %p78 = scmp.eq.s32.totalorder %s31, 0
      %p79 = por %p77, %p78
      %s81 = sadd.s32 %s80, 1
      %p84 = scmp.eq.s32.totalorder %s25, 7
      %p85 = scmp.ne.s32.totalorder %s80, %s82
      %p86 = scmp.eq.s32.totalorder %s25, 0
      %p87 = por %p85, %p86
      %p88 = scmp.ne.s32.totalorder %s80, %s82
      %p89 = scmp.eq.s32.totalorder %s30, 7
      %p90 = por %p88, %p89
      %p91 = scmp.ne.s32.totalorder %s82, %s83
      %p92 = scmp.eq.s32.totalorder %s30, 0
      %p93 = por %p91, %p92
      %p94 = scmp.ne.s32.totalorder %s82, %s83
      %p95 = scmp.eq.s32.totalorder %s31, 7
      %p96 = por %p94, %p95
      %p98 = scmp.ne.s32.totalorder %s83, %s97
      %p99 = scmp.eq.s32.totalorder %s31, 0
      %p100 = por %p98, %p99
      %s102 = sadd.s32 %s101, 1
      %p105 = scmp.eq.s32.totalorder %s25, 7
      %p106 = scmp.ne.s32.totalorder %s101, %s103
      %p107 = scmp.eq.s32.totalorder %s25, 0
      %p108 = por %p106, %p107
      %p109 = scmp.ne.s32.totalorder %s101, %s103
      %p110 = scmp.eq.s32.totalorder %s30, 7
      %p111 = por %p109, %p110
      %p112 = scmp.ne.s32.totalorder %s103, %s104
      %p113 = scmp.eq.s32.totalorder %s30, 0
      %p114 = por %p112, %p113
      %p115 = scmp.ne.s32.totalorder %s103, %s104
      %p116 = scmp.eq.s32.totalorder %s31, 7
      %p117 = por %p115, %p116
      %p119 = scmp.ne.s32.totalorder %s104, %s118
      %p120 = scmp.eq.s32.totalorder %s31, 0
      %p121 = por %p119, %p120
      %s123 = sadd.s32 %s122, 1
      %p126 = scmp.eq.s32.totalorder %s25, 7
      %p127 = scmp.ne.s32.totalorder %s122, %s124
      %p128 = scmp.eq.s32.totalorder %s25, 0
      %p129 = por %p127, %p128
      %p130 = scmp.ne.s32.totalorder %s122, %s124
      %p131 = scmp.eq.s32.totalorder %s30, 7
      %p132 = por %p130, %p131
      %p133 = scmp.ne.s32.totalorder %s124, %s125
      %p134 = scmp.eq.s32.totalorder %s30, 0
      %p135 = por %p133, %p134
      %p136 = scmp.ne.s32.totalorder %s124, %s125
      %p137 = scmp.eq.s32.totalorder %s31, 7
      %p138 = por %p136, %p137
      %p140 = scmp.ne.s32.totalorder %s125, %s139
      %p141 = scmp.eq.s32.totalorder %s31, 0
      %p142 = por %p140, %p141
      %s144 = sadd.s32 %s143, 1
      %p147 = scmp.eq.s32.totalorder %s25, 7
      %p148 = scmp.ne.s32.totalorder %s143, %s145
      %p149 = scmp.eq.s32.totalorder %s25, 0
      %p150 = por %p148, %p149
      %p151 = scmp.ne.s32.totalorder %s143, %s145
      %p152 = scmp.eq.s32.totalorder %s30, 7
      %p153 = por %p151, %p152
      %p154 = scmp.ne.s32.totalorder %s145, %s146
      %p155 = scmp.eq.s32.totalorder %s30, 0
      %p156 = por %p154, %p155
      %p157 = scmp.ne.s32.totalorder %s145, %s146
      %p158 = scmp.eq.s32.totalorder %s31, 7
      %p159 = por %p157, %p158
      %p161 = scmp.ne.s32.totalorder %s146, %s160
      %p162 = scmp.eq.s32.totalorder %s31, 0
      %p163 = por %p161, %p162
      %s165 = sadd.s32 %s164, 1
      %p168 = scmp.eq.s32.totalorder %s25, 7
      %p169 = scmp.ne.s32.totalorder %s164, %s166
      %p170 = scmp.eq.s32.totalorder %s25, 0
      %p171 = por %p169, %p170
      %p172 = scmp.ne.s32.totalorder %s164, %s166
      %p173 = scmp.eq.s32.totalorder %s30, 7
      %p174 = por %p172, %p173
      %p175 = scmp.ne.s32.totalorder %s166, %s167
      %p176 = scmp.eq.s32.totalorder %s30, 0
      %p177 = por %p175, %p176
      %p178 = scmp.ne.s32.totalorder %s166, %s167
      %p179 = scmp.eq.s32.totalorder %s31, 7
      %p180 = por %p178, %p179
      %p182 = scmp.ne.s32.totalorder %s167, %s181
      %p183 = scmp.eq.s32.totalorder %s31, 0
      %p184 = por %p182, %p183
      %s186 = sadd.s32 %s185, 1
      %p189 = scmp.eq.s32.totalorder %s25, 7
      %p190 = scmp.ne.s32.totalorder %s185, %s187
      %p191 = scmp.eq.s32.totalorder %s25, 0
      %p192 = por %p190, %p191
      %p193 = scmp.ne.s32.totalorder %s185, %s187
      %p194 = scmp.eq.s32.totalorder %s30, 7
      %p195 = por %p193, %p194
      %p196 = scmp.ne.s32.totalorder %s187, %s188
      %p197 = scmp.eq.s32.totalorder %s30, 0
      %p198 = por %p196, %p197
      %p199 = scmp.ne.s32.totalorder %s187, %s188
      %p200 = scmp.eq.s32.totalorder %s31, 7
      %p201 = por %p199, %p200
      %p203 = scmp.ne.s32.totalorder %s188, %s202
      %p204 = scmp.eq.s32.totalorder %s31, 0
      %p205 = por %p203, %p204
      %s207 = sadd.s32 %s206, 1
      %p210 = scmp.eq.s32.totalorder %s25, 7
      %p211 = scmp.ne.s32.totalorder %s206, %s208
      %p212 = scmp.eq.s32.totalorder %s25, 0
      %p213 = por %p211, %p212
      %p214 = scmp.ne.s32.totalorder %s206, %s208
      %p215 = scmp.eq.s32.totalorder %s30, 7
      %p216 = por %p214, %p215
      %p217 = scmp.ne.s32.totalorder %s208, %s209
      %p218 = scmp.eq.s32.totalorder %s30, 0
      %p219 = por %p217, %p218
      %p220 = scmp.ne.s32.totalorder %s208, %s209
      %p221 = scmp.eq.s32.totalorder %s31, 7
      %p222 = por %p220, %p221
      %p224 = scmp.ne.s32.totalorder %s209, %s223
      %p225 = scmp.eq.s32.totalorder %s31, 0
      %p226 = por %p224, %p225
      %s227 = ssub.s32 %s25, %s32
      %p228 = scmp.eq.s32.totalorder %s227, 0
      %s230 = sadd.s32 %s229, 1
      %s231 = scalar_select %p228, %s229, %s230
      %p234 = pneg %p228
      %p235 = scmp.eq.s32.totalorder %s25, 7
      %p236 = por %p234, %p235
      %p237 = scmp.ne.s32.totalorder %s229, %s232
      %p238 = scmp.eq.s32.totalorder %s25, 0
      %p239 = por %p237, %p238
      %p240 = scmp.ne.s32.totalorder %s229, %s232
      %p241 = scmp.eq.s32.totalorder %s30, 7
      %p242 = por %p240, %p241
      %p243 = scmp.ne.s32.totalorder %s232, %s233
      %p244 = scmp.eq.s32.totalorder %s30, 0
      %p245 = por %p243, %p244
      %p246 = scmp.ne.s32.totalorder %s232, %s233
      %p247 = scmp.eq.s32.totalorder %s31, 7
      %p248 = por %p246, %p247
      %p250 = scmp.ne.s32.totalorder %s233, %s249
      %p251 = scmp.eq.s32.totalorder %s31, 0
      %p252 = por %p250, %p251
      %s254 = sadd.s32 %s253, 1
      %p257 = scmp.eq.s32.totalorder %s25, 7
      %p258 = scmp.ne.s32.totalorder %s253, %s255
      %p259 = scmp.eq.s32.totalorder %s25, 0
      %p260 = por %p258, %p259
      %p261 = scmp.ne.s32.totalorder %s253, %s255
      %p262 = scmp.eq.s32.totalorder %s30, 7
      %p263 = por %p261, %p262
      %p264 = scmp.ne.s32.totalorder %s255, %s256
      %p265 = scmp.eq.s32.totalorder %s30, 0
      %p266 = por %p264, %p265
      %p267 = scmp.ne.s32.totalorder %s255, %s256
      %p268 = scmp.eq.s32.totalorder %s31, 7
      %p269 = por %p267, %p268
      %p271 = scmp.ne.s32.totalorder %s256, %s270
      %p272 = scmp.eq.s32.totalorder %s31, 0
      %p273 = por %p271, %p272
      %p274 = scmp.le.s32.totalorder 1, %s25
      %p275 = scmp.lt.s32.totalorder %s25, 9
      %p276 = pnand %p274, %p275
      %p277 = pneg %p276
      // Predicated region
      $region9: #{_rnn_forward_impl.1} parent=5 // pred_check
        _
      $region10: #{_rnn_forward_impl.1} parent=5 // pred_check_branch
        %279 = sbr.rel (%p276) target = $region12
      $region11: #{_rnn_forward_impl.1} parent=5 // pred_region
        %s280 = ssub.s32 %s25, 1
        // Predicated region
        $region13: #{_rnn_forward_impl.1} parent=11 // pred_check
          %p281 = pneg %p46
        $region14: #{_rnn_forward_impl.1} parent=11 // pred_check_branch
          %283 = sbr.rel (%p281) target = $region16
        $region15: #{_rnn_forward_impl.1} parent=11 // pred_region
          _
        $region16: #{_rnn_forward_impl.1} parent=11 // pred_fallthru
          _
        // Predicated region
        $region17: #{_rnn_forward_impl.1} parent=11 // pred_check
          %p284 = pneg %p93
        $region18: #{_rnn_forward_impl.1} parent=11 // pred_check_branch
          %286 = sbr.rel (%p284) target = $region20
        $region19: #{_rnn_forward_impl.1} parent=11 // pred_region
          _
        $region20: #{_rnn_forward_impl.1} parent=11 // pred_fallthru
          _
        // Predicated region
        $region21: #{_rnn_forward_impl.1} parent=11 // pred_check
          %p287 = pneg %p114
        $region22: #{_rnn_forward_impl.1} parent=11 // pred_check_branch
          %289 = sbr.rel (%p287) target = $region24
        $region23: #{_rnn_forward_impl.1} parent=11 // pred_region
          _
        $region24: #{_rnn_forward_impl.1} parent=11 // pred_fallthru
          _
        // Predicated region
        $region25: #{_rnn_forward_impl.1} parent=11 // pred_check
          %p290 = pneg %p135
        $region26: #{_rnn_forward_impl.1} parent=11 // pred_check_branch
          %292 = sbr.rel (%p290) target = $region28
        $region27: #{_rnn_forward_impl.1} parent=11 // pred_region
          _
        $region28: #{_rnn_forward_impl.1} parent=11 // pred_fallthru
          _
        // Predicated region
        $region29: #{_rnn_forward_impl.1} parent=11 // pred_check
          %p293 = pneg %p156
        $region30: #{_rnn_forward_impl.1} parent=11 // pred_check_branch
          %295 = sbr.rel (%p293) target = $region32
        $region31: #{_rnn_forward_impl.1} parent=11 // pred_region
          %s297 = ssub.s32 2048, 2048
          %298 = vsyncadd [#allocation8], %s297
          %s299 = sshll.u32 [#allocation7], 4
          %s300 = int_to_ptr.vmem [resolvable:$true] %s299
          %305 = dma.hbm_to_vmem [thread:$0]  %s5, 2048, %s300, [#allocation8], 128, 128, 8
        $region32: #{_rnn_forward_impl.1} parent=11 // pred_fallthru
          _
        // Predicated region
        $region33: #{_rnn_forward_impl.1} parent=11 // pred_check
          %p306 = pneg %p177
        $region34: #{_rnn_forward_impl.1} parent=11 // pred_check_branch
          %308 = sbr.rel (%p306) target = $region36
        $region35: #{_rnn_forward_impl.1} parent=11 // pred_region
          _
        $region36: #{_rnn_forward_impl.1} parent=11 // pred_fallthru
          _
        // Predicated region
        $region37: #{_rnn_forward_impl.1} parent=11 // pred_check
          %p309 = pneg %p198
        $region38: #{_rnn_forward_impl.1} parent=11 // pred_check_branch
          %311 = sbr.rel (%p309) target = $region40
        $region39: #{_rnn_forward_impl.1} parent=11 // pred_region
          %s313 = ssub.s32 2048, 2048
          %314 = vsyncadd [#allocation8], %s313
          %s315 = sshll.u32 [#allocation9], 4
          %s316 = int_to_ptr.vmem [resolvable:$true] %s315
          %321 = dma.hbm_to_vmem [thread:$0]  %s7, 2048, %s316, [#allocation8], 128, 128, 8
        $region40: #{_rnn_forward_impl.1} parent=11 // pred_fallthru
          _
        // Predicated region
        $region41: #{_rnn_forward_impl.1} parent=11 // pred_check
          %p322 = pneg %p219
        $region42: #{_rnn_forward_impl.1} parent=11 // pred_check_branch
          %324 = sbr.rel (%p322) target = $region44
        $region43: #{_rnn_forward_impl.1} parent=11 // pred_region
          _
        $region44: #{_rnn_forward_impl.1} parent=11 // pred_fallthru
          _
      $region12: #{_rnn_forward_impl.1} parent=5 // pred_fallthru
        _
      %p325 = scmp.lt.s32.totalorder %s25, 8
      // Predicated region
      $region45: #{_rnn_forward_impl.1} parent=5 // pred_check
        %p326 = pneg %p325
      $region46: #{_rnn_forward_impl.1} parent=5 // pred_check_branch
        %328 = sbr.rel (%p326) target = $region48
      $region47: #{_rnn_forward_impl.1} parent=5 // pred_region
        // Predicated region
        $region49: #{_rnn_forward_impl.1} parent=47 // pred_check
          %p329 = pneg %p66
        $region50: #{_rnn_forward_impl.1} parent=47 // pred_check_branch
          %331 = sbr.rel (%p329) target = $region52
        $region51: #{_rnn_forward_impl.1} parent=47 // pred_region
          %s332 = sand.u32 %s56, 1
          %s333 = scalar_lea.sflag [#allocation5], %s332
          %s334 = sand.u32 %s56, 1
          %s335 = smul.addr %s334, 8
          %s336 = scalar_lea.vmem [#allocation4], %s335
          %s338 = ssub.s32 128, 128
          %339 = vsyncadd %s333, %s338
          %s340 = smul.addr %s25, 128
          %s341 = scalar_lea.hbm %s1, %s340
          %s343 = sshll.u32 %s336, 4
          %s344 = int_to_ptr.vmem [resolvable:$true] %s343
          %346 = dma.hbm_to_vmem [thread:$0]  %s341, 128, %s344, %s333
        $region52: #{_rnn_forward_impl.1} parent=47 // pred_fallthru
          _
      $region48: #{_rnn_forward_impl.1} parent=5 // pred_fallthru
        _
      %p347 = scmp.le.s32.totalorder 1, %s25
      %p348 = scmp.lt.s32.totalorder %s25, 9
      %p349 = pnand %p347, %p348
      %p350 = pneg %p349
      // Predicated region
      $region53: #{_rnn_forward_impl.1} parent=5 // pred_check
        _
      $region54: #{_rnn_forward_impl.1} parent=5 // pred_check_branch
        %352 = sbr.rel (%p349) target = $region56
      $region55: #{_rnn_forward_impl.1} parent=5 // pred_region
        %s353 = ssub.s32 %s25, 1
        %s354 = sand.u32 %s59, 1
        %s355 = scalar_lea.sflag [#allocation5], %s354
        %s356 = sand.u32 %s59, 1
        %s357 = smul.addr %s356, 8
        %s358 = scalar_lea.vmem [#allocation4], %s357
        // Predicated region
        $region57: #{_rnn_forward_impl.1} parent=55 // pred_check
          %p359 = pneg %p72
        $region58: #{_rnn_forward_impl.1} parent=55 // pred_check_branch
          %361 = sbr.rel (%p359) target = $region60
        $region59: #{_rnn_forward_impl.1} parent=55 // pred_region
          %362 = dma.done %s355, 128
        $region60: #{_rnn_forward_impl.1} parent=55 // pred_fallthru
          _
        // Predicated region
        $region61: #{_rnn_forward_impl.1} parent=55 // pred_check
          %p363 = pneg %p156
        $region62: #{_rnn_forward_impl.1} parent=55 // pred_check_branch
          %365 = sbr.rel (%p363) target = $region64
        $region63: #{_rnn_forward_impl.1} parent=55 // pred_region
          %366 = dma.done [#allocation8], 2048
        $region64: #{_rnn_forward_impl.1} parent=55 // pred_fallthru
          _
        // Predicated region
        $region65: #{_rnn_forward_impl.1} parent=55 // pred_check
          %p367 = pneg %p198
        $region66: #{_rnn_forward_impl.1} parent=55 // pred_check_branch
          %369 = sbr.rel (%p367) target = $region68
        $region67: #{_rnn_forward_impl.1} parent=55 // pred_region
          %370 = dma.done [#allocation8], 2048
        $region68: #{_rnn_forward_impl.1} parent=55 // pred_fallthru
          _
        %p371 = pneg %p46
        %p372 = pneg %p43
        %s373 = sand.u32 %s59, 1
        %s374 = scalar_lea.sflag [#allocation5], %s373
        %s375 = sand.u32 %s59, 1
        %s376 = smul.addr %s375, 8
        %s377 = scalar_lea.vmem [#allocation4], %s376
        %p378 = pneg %p72
        %p379 = pneg %p69
        %p380 = pneg %p93
        %p381 = pneg %p90
        %p382 = pneg %p114
        %p383 = pneg %p111
        %p384 = pneg %p135
        %p385 = pneg %p132
        %p386 = pneg %p156
        %p387 = pneg %p153
        %p388 = pneg %p177
        %p389 = pneg %p174
        %p390 = pneg %p198
        %p391 = pneg %p195
        %p392 = pneg %p219
        %p393 = pneg %p216
        %p394 = pneg %p245
        %p395 = pneg %p242
        %s396 = sand.u32 %s232, 1
        %s397 = scalar_lea.sflag [#allocation6], %s396
        %s398 = sand.u32 %s232, 1
        %s399 = smul.addr %s398, 8
        %s400 = scalar_lea.vmem [#allocation10], %s399
        %p401 = pneg %p266
        %p402 = pneg %p263
        %p403 = scmp.eq.s32.totalorder %s30, 0
        // Predicated region
        $region69: #{_rnn_forward_impl.1} parent=55 // pred_check
          %p404 = pneg %p403
        $region70: #{_rnn_forward_impl.1} parent=55 // pred_check_branch
          %406 = sbr.rel (%p404) target = $region72
        $region71: #{_rnn_forward_impl.1} parent=55 // pred_region
          %v407 = vld [vmem:[%s0] sm:$0xff]
          %v408 = vld [vmem:[%s3] sm:$0xf]
          %v409 = vld [vmem:[%s6] sm:$0x1]
          %v411 = vlaneseq
          %v412 = vshrl.u32 %v411, 7
          %v413 = vsub.s32 0, %v412
          %v414 = vrot.slane %v409, %v413
          %vm416 = vcmask 31744
          %v418 = vsel %vm416, %v407, 0
          %vm420 = vcmask 1043456
          %v422 = vsel %vm420, %v408, 0
          %424 = vmatprep.subr.mxu0 0.0
          %425 = vmatpush1.msra.mxu0 0.0
          %426 = vmatprep.subr.mxu0 0.0
          %427 = vmatpush1.msra.mxu0 0.0
          %428 = vmatprep.subr.mxu0 0.0
          %429 = vmatpush1.msra.mxu0 0.0
          %430 = vmatprep.subr.mxu0 0.0
          %431 = vmatpush1.msra.mxu0 0.0
          %432 = vmatprep.subr.mxu0 0.0
          %433 = vmatpush1.msra.mxu0 0.0
          %434 = vmatprep.subr.mxu0 0.0
          %435 = vmatpush1.msra.mxu0 0.0
          %436 = vmatprep.subr.mxu0 0.0
          %437 = vmatpush1.msra.mxu0 0.0
          %438 = vmatprep.subr.mxu0 0.0
          %439 = vmatpush1.msra.mxu0 0.0
          %440 = vmatprep.subr.mxu0 0.0
          %441 = vmatpush1.msra.mxu0 0.0
          %442 = vmatprep.subr.mxu0 0.0
          %443 = vmatpush1.msra.mxu0 0.0
          %444 = vmatprep.subr.mxu0 0.0
          %445 = vmatpush1.msra.mxu0 0.0
          %446 = vmatprep.subr.mxu0 0.0
          %447 = vmatpush1.msra.mxu0 0.0
          %448 = vmatprep.subr.mxu0 0.0
          %449 = vmatpush1.msra.mxu0 0.0
          %450 = vmatprep.subr.mxu0 0.0
          %451 = vmatpush1.msra.mxu0 0.0
          %452 = vmatprep.subr.mxu0 0.0
          %453 = vmatpush1.msra.mxu0 0.0
          %454 = vmatprep.subr.mxu0 0.0
          %455 = vmatpush1.msra.mxu0 %v422
          %456 = vmatprep.subr.mxu0 0.0
          %457 = vmatpush2.msra.mxu0 0.0
          %458 = vmatprep.subr.mxu0 0.0
          %459 = vmatpush2.msra.mxu0 0.0
          %460 = vmatprep.subr.mxu0 0.0
          %461 = vmatpush2.msra.mxu0 0.0
          %462 = vmatprep.subr.mxu0 0.0
          %463 = vmatpush2.msra.mxu0 0.0
          %464 = vmatprep.subr.mxu0 0.0
          %465 = vmatpush2.msra.mxu0 0.0
          %466 = vmatprep.subr.mxu0 0.0
          %467 = vmatpush2.msra.mxu0 0.0
          %468 = vmatprep.subr.mxu0 0.0
          %469 = vmatpush2.msra.mxu0 0.0
          %470 = vmatprep.subr.mxu0 0.0
          %471 = vmatpush2.msra.mxu0 0.0
          %472 = vmatprep.subr.mxu0 0.0
          %473 = vmatpush2.msra.mxu0 0.0
          %474 = vmatprep.subr.mxu0 0.0
          %475 = vmatpush2.msra.mxu0 0.0
          %476 = vmatprep.subr.mxu0 0.0
          %477 = vmatpush2.msra.mxu0 0.0
          %478 = vmatprep.subr.mxu0 0.0
          %479 = vmatpush2.msra.mxu0 0.0
          %480 = vmatprep.subr.mxu0 0.0
          %481 = vmatpush2.msra.mxu0 0.0
          %482 = vmatprep.subr.mxu0 0.0
          %483 = vmatpush2.msra.mxu0 0.0
          %484 = vmatprep.subr.mxu0 0.0
          %485 = vmatpush2.msra.mxu0 0.0
          %486 = vmatprep.subr.mxu0 0.0
          %487 = vmatpush2.msra.mxu0 0.0
          %488 = vmatprep.mubr.f32.mxu0 0.0
          %489 = vmatmul.mubr.f32.gmra.mxu0 %v418
          %v490 = vpop.f32.mrf.mxu0
          %v491 = vadd.f32 %v414, %v490
          %v492 = vpop.f32.mrf.mxu0
          %493 = vdwg.mxu0
          %494 = vst [vmem:[#allocation3] sm:$0xff] %v491
          %v495 = vld [vmem:[%s2] sm:$0xff]
          %496 = vst [vmem:[#allocation2] sm:$0xff] %v495
        $region72: #{_rnn_forward_impl.1} parent=55 // pred_fallthru
          _
        %v497 = vld [vmem:[%s358] sm:$0xff]
        %v498 = vld [vmem:[#allocation3] sm:$0xff]
        %v499 = vld [vmem:[%s4] sm:$0xff]
        %vm500 = vcmask 64512
        %v502 = vsel %vm500, %v497, 0
        %504 = vmatprep.subr.mxu0 0.0
        %505 = vmatpush1.msra.mxu0 0.0
        %506 = vmatprep.subr.mxu0 0.0
        %507 = vmatpush1.msra.mxu0 0.0
        %508 = vmatprep.subr.mxu0 0.0
        %509 = vmatpush1.msra.mxu0 0.0
        %510 = vmatprep.subr.mxu0 0.0
        %511 = vmatpush1.msra.mxu0 0.0
        %512 = vmatprep.subr.mxu0 0.0
        %513 = vmatpush1.msra.mxu0 0.0
        %514 = vmatprep.subr.mxu0 0.0
        %515 = vmatpush1.msra.mxu0 0.0
        %516 = vmatprep.subr.mxu0 0.0
        %517 = vmatpush1.msra.mxu0 0.0
        %518 = vmatprep.subr.mxu0 0.0
        %519 = vmatpush1.msra.mxu0 0.0
        %520 = vmatprep.subr.mxu0 0.0
        %521 = vmatpush1.msra.mxu0 0.0
        %522 = vmatprep.subr.mxu0 0.0
        %523 = vmatpush1.msra.mxu0 0.0
        %524 = vmatprep.subr.mxu0 0.0
        %525 = vmatpush1.msra.mxu0 0.0
        %526 = vmatprep.subr.mxu0 0.0
        %527 = vmatpush1.msra.mxu0 0.0
        %528 = vmatprep.subr.mxu0 0.0
        %529 = vmatpush1.msra.mxu0 0.0
        %530 = vmatprep.subr.mxu0 0.0
        %531 = vmatpush1.msra.mxu0 0.0
        %532 = vmatprep.subr.mxu0 0.0
        %533 = vmatpush1.msra.mxu0 0.0
        %534 = vmatprep.subr.mxu0 0.0
        %535 = vmatpush1.msra.mxu0 %v499
        %536 = vmatprep.subr.mxu0 0.0
        %537 = vmatpush2.msra.mxu0 0.0
        %538 = vmatprep.subr.mxu0 0.0
        %539 = vmatpush2.msra.mxu0 0.0
        %540 = vmatprep.subr.mxu0 0.0
        %541 = vmatpush2.msra.mxu0 0.0
        %542 = vmatprep.subr.mxu0 0.0
        %543 = vmatpush2.msra.mxu0 0.0
        %544 = vmatprep.subr.mxu0 0.0
        %545 = vmatpush2.msra.mxu0 0.0
        %546 = vmatprep.subr.mxu0 0.0
        %547 = vmatpush2.msra.mxu0 0.0
        %548 = vmatprep.subr.mxu0 0.0
        %549 = vmatpush2.msra.mxu0 0.0
        %550 = vmatprep.subr.mxu0 0.0
        %551 = vmatpush2.msra.mxu0 0.0
        %552 = vmatprep.subr.mxu0 0.0
        %553 = vmatpush2.msra.mxu0 0.0
        %554 = vmatprep.subr.mxu0 0.0
        %555 = vmatpush2.msra.mxu0 0.0
        %556 = vmatprep.subr.mxu0 0.0
        %557 = vmatpush2.msra.mxu0 0.0
        %558 = vmatprep.subr.mxu0 0.0
        %559 = vmatpush2.msra.mxu0 0.0
        %560 = vmatprep.subr.mxu0 0.0
        %561 = vmatpush2.msra.mxu0 0.0
        %562 = vmatprep.subr.mxu0 0.0
        %563 = vmatpush2.msra.mxu0 0.0
        %564 = vmatprep.subr.mxu0 0.0
        %565 = vmatpush2.msra.mxu0 0.0
        %566 = vmatprep.subr.mxu0 0.0
        %567 = vmatpush2.msra.mxu0 0.0
        %568 = vmatprep.mubr.f32.mxu0 0.0
        %569 = vmatmul.mubr.f32.gmra.mxu0 %v502
        %v570 = vpop.f32.mrf.mxu0
        %v571 = vadd.f32 0.0, %v570
        %v572 = vpop.f32.mrf.mxu0
        %573 = vdwg.mxu0
        %v574 = vadd.f32 %v498, %v571
        %v575 = vld [vmem:[#allocation2] sm:$0xff]
        %v576 = vld [vmem:[#allocation7] sm:$0xff]
        %v577 = vld [vmem:[#allocation7 + $0x8] sm:$0xff]
        %v578 = vld [vmem:[#allocation7 + $0x10] sm:$0xff]
        %v579 = vld [vmem:[#allocation7 + $0x18] sm:$0xff]
        %v580 = vld [vmem:[#allocation7 + $0x20] sm:$0xff]
        %v581 = vld [vmem:[#allocation7 + $0x28] sm:$0xff]
        %v582 = vld [vmem:[#allocation7 + $0x30] sm:$0xff]
        %v583 = vld [vmem:[#allocation7 + $0x38] sm:$0xff]
        %v584 = vld [vmem:[#allocation7 + $0x40] sm:$0xff]
        %v585 = vld [vmem:[#allocation7 + $0x48] sm:$0xff]
        %v586 = vld [vmem:[#allocation7 + $0x50] sm:$0xff]
        %v587 = vld [vmem:[#allocation7 + $0x58] sm:$0xff]
        %v588 = vld [vmem:[#allocation7 + $0x60] sm:$0xff]
        %v589 = vld [vmem:[#allocation7 + $0x68] sm:$0xff]
        %v590 = vld [vmem:[#allocation7 + $0x70] sm:$0xff]
        %v591 = vld [vmem:[#allocation7 + $0x78] sm:$0xff]
        %592 = vmatprep.subr.mxu0 0.0
        %593 = vmatpush1.msra.mxu0 %v591
        %594 = vmatprep.subr.mxu0 0.0
        %595 = vmatpush1.msra.mxu0 %v590
        %596 = vmatprep.subr.mxu0 0.0
        %597 = vmatpush1.msra.mxu0 %v589
        %598 = vmatprep.subr.mxu0 0.0
        %599 = vmatpush1.msra.mxu0 %v588
        %600 = vmatprep.subr.mxu0 0.0
        %601 = vmatpush1.msra.mxu0 %v587
        %602 = vmatprep.subr.mxu0 0.0
        %603 = vmatpush1.msra.mxu0 %v586
        %604 = vmatprep.subr.mxu0 0.0
        %605 = vmatpush1.msra.mxu0 %v585
        %606 = vmatprep.subr.mxu0 0.0
        %607 = vmatpush1.msra.mxu0 %v584
        %608 = vmatprep.subr.mxu0 0.0
        %609 = vmatpush1.msra.mxu0 %v583
        %610 = vmatprep.subr.mxu0 0.0
        %611 = vmatpush1.msra.mxu0 %v582
        %612 = vmatprep.subr.mxu0 0.0
        %613 = vmatpush1.msra.mxu0 %v581
        %614 = vmatprep.subr.mxu0 0.0
        %615 = vmatpush1.msra.mxu0 %v580
        %616 = vmatprep.subr.mxu0 0.0
        %617 = vmatpush1.msra.mxu0 %v579
        %618 = vmatprep.subr.mxu0 0.0
        %619 = vmatpush1.msra.mxu0 %v578
        %620 = vmatprep.subr.mxu0 0.0
        %621 = vmatpush1.msra.mxu0 %v577
        %622 = vmatprep.subr.mxu0 0.0
        %623 = vmatpush1.msra.mxu0 %v576
        %624 = vmatprep.subr.mxu0 0.0
        %625 = vmatpush2.msra.mxu0 0.0
        %626 = vmatprep.subr.mxu0 0.0
        %627 = vmatpush2.msra.mxu0 0.0
        %628 = vmatprep.subr.mxu0 0.0
        %629 = vmatpush2.msra.mxu0 0.0
        %630 = vmatprep.subr.mxu0 0.0
        %631 = vmatpush2.msra.mxu0 0.0
        %632 = vmatprep.subr.mxu0 0.0
        %633 = vmatpush2.msra.mxu0 0.0
        %634 = vmatprep.subr.mxu0 0.0
        %635 = vmatpush2.msra.mxu0 0.0
        %636 = vmatprep.subr.mxu0 0.0
        %637 = vmatpush2.msra.mxu0 0.0
        %638 = vmatprep.subr.mxu0 0.0
        %639 = vmatpush2.msra.mxu0 0.0
        %640 = vmatprep.subr.mxu0 0.0
        %641 = vmatpush2.msra.mxu0 0.0
        %642 = vmatprep.subr.mxu0 0.0
        %643 = vmatpush2.msra.mxu0 0.0
        %644 = vmatprep.subr.mxu0 0.0
        %645 = vmatpush2.msra.mxu0 0.0
        %646 = vmatprep.subr.mxu0 0.0
        %647 = vmatpush2.msra.mxu0 0.0
        %648 = vmatprep.subr.mxu0 0.0
        %649 = vmatpush2.msra.mxu0 0.0
        %650 = vmatprep.subr.mxu0 0.0
        %651 = vmatpush2.msra.mxu0 0.0
        %652 = vmatprep.subr.mxu0 0.0
        %653 = vmatpush2.msra.mxu0 0.0
        %654 = vmatprep.subr.mxu0 0.0
        %655 = vmatpush2.msra.mxu0 0.0
        %656 = vmatprep.mubr.f32.mxu0 0.0
        %657 = vmatmul.mubr.f32.gmra.mxu0 %v575
        %v658 = vpop.f32.mrf.mxu0
        %v659 = vadd.f32 0.0, %v658
        %v660 = vpop.f32.mrf.mxu0
        %661 = vdwg.mxu0
        %v662 = vadd.f32 %v574, %v659
        %v663 = vld [vmem:[#allocation9] sm:$0xff]
        %v664 = vld [vmem:[#allocation9 + $0x8] sm:$0xff]
        %v665 = vld [vmem:[#allocation9 + $0x10] sm:$0xff]
        %v666 = vld [vmem:[#allocation9 + $0x18] sm:$0xff]
        %v667 = vld [vmem:[#allocation9 + $0x20] sm:$0xff]
        %v668 = vld [vmem:[#allocation9 + $0x28] sm:$0xff]
        %v669 = vld [vmem:[#allocation9 + $0x30] sm:$0xff]
        %v670 = vld [vmem:[#allocation9 + $0x38] sm:$0xff]
        %v671 = vld [vmem:[#allocation9 + $0x40] sm:$0xff]
        %v672 = vld [vmem:[#allocation9 + $0x48] sm:$0xff]
        %v673 = vld [vmem:[#allocation9 + $0x50] sm:$0xff]
        %v674 = vld [vmem:[#allocation9 + $0x58] sm:$0xff]
        %v675 = vld [vmem:[#allocation9 + $0x60] sm:$0xff]
        %v676 = vld [vmem:[#allocation9 + $0x68] sm:$0xff]
        %v677 = vld [vmem:[#allocation9 + $0x70] sm:$0xff]
        %v678 = vld [vmem:[#allocation9 + $0x78] sm:$0xff]
        %v679 = vld [vmem:[%s8] sm:$0x1]
        %v681 = vlaneseq
        %v682 = vshrl.u32 %v681, 7
        %v683 = vsub.s32 0, %v682
        %v684 = vrot.slane %v679, %v683
        %686 = vmatprep.subr.mxu0 0.0
        %687 = vmatpush1.msra.mxu0 %v678
        %688 = vmatprep.subr.mxu0 0.0
        %689 = vmatpush1.msra.mxu0 %v677
        %690 = vmatprep.subr.mxu0 0.0
        %691 = vmatpush1.msra.mxu0 %v676
        %692 = vmatprep.subr.mxu0 0.0
        %693 = vmatpush1.msra.mxu0 %v675
        %694 = vmatprep.subr.mxu0 0.0
        %695 = vmatpush1.msra.mxu0 %v674
        %696 = vmatprep.subr.mxu0 0.0
        %697 = vmatpush1.msra.mxu0 %v673
        %698 = vmatprep.subr.mxu0 0.0
        %699 = vmatpush1.msra.mxu0 %v672
        %700 = vmatprep.subr.mxu0 0.0
        %701 = vmatpush1.msra.mxu0 %v671
        %702 = vmatprep.subr.mxu0 0.0
        %703 = vmatpush1.msra.mxu0 %v670
        %704 = vmatprep.subr.mxu0 0.0
        %705 = vmatpush1.msra.mxu0 %v669
        %706 = vmatprep.subr.mxu0 0.0
        %707 = vmatpush1.msra.mxu0 %v668
        %708 = vmatprep.subr.mxu0 0.0
        %709 = vmatpush1.msra.mxu0 %v667
        %710 = vmatprep.subr.mxu0 0.0
        %711 = vmatpush1.msra.mxu0 %v666
        %712 = vmatprep.subr.mxu0 0.0
        %713 = vmatpush1.msra.mxu0 %v665
        %714 = vmatprep.subr.mxu0 0.0
        %715 = vmatpush1.msra.mxu0 %v664
        %716 = vmatprep.subr.mxu0 0.0
        %717 = vmatpush1.msra.mxu0 %v663
        %718 = vmatprep.subr.mxu0 0.0
        %719 = vmatpush2.msra.mxu0 0.0
        %720 = vmatprep.subr.mxu0 0.0
        %721 = vmatpush2.msra.mxu0 0.0
        %722 = vmatprep.subr.mxu0 0.0
        %723 = vmatpush2.msra.mxu0 0.0
        %724 = vmatprep.subr.mxu0 0.0
        %725 = vmatpush2.msra.mxu0 0.0
        %726 = vmatprep.subr.mxu0 0.0
        %727 = vmatpush2.msra.mxu0 0.0
        %728 = vmatprep.subr.mxu0 0.0
        %729 = vmatpush2.msra.mxu0 0.0
        %730 = vmatprep.subr.mxu0 0.0
        %731 = vmatpush2.msra.mxu0 0.0
        %732 = vmatprep.subr.mxu0 0.0
        %733 = vmatpush2.msra.mxu0 0.0
        %734 = vmatprep.subr.mxu0 0.0
        %735 = vmatpush2.msra.mxu0 0.0
        %736 = vmatprep.subr.mxu0 0.0
        %737 = vmatpush2.msra.mxu0 0.0
        %738 = vmatprep.subr.mxu0 0.0
        %739 = vmatpush2.msra.mxu0 0.0
        %740 = vmatprep.subr.mxu0 0.0
        %741 = vmatpush2.msra.mxu0 0.0
        %742 = vmatprep.subr.mxu0 0.0
        %743 = vmatpush2.msra.mxu0 0.0
        %744 = vmatprep.subr.mxu0 0.0
        %745 = vmatpush2.msra.mxu0 0.0
        %746 = vmatprep.subr.mxu0 0.0
        %747 = vmatpush2.msra.mxu0 0.0
        %748 = vmatprep.subr.mxu0 0.0
        %749 = vmatpush2.msra.mxu0 0.0
        %750 = vmatprep.mubr.f32.mxu0 0.0
        %751 = vmatmul.mubr.f32.gmra.mxu0 %v662
        %v752 = vpop.f32.mrf.mxu0
        %v753 = vadd.f32 %v684, %v752
        %v754 = vpop.f32.mrf.mxu0
        %755 = vdwg.mxu0
        %756 = vmax.xlane.f32.xlu0 %v753
        %v757 = vpop.xlane.xlu0 %756
        %v758 = vsub.f32 %v753, %v757
        %v759 = vmul.f32 %v758, 1.442695
        %v760 = vpow.pop %v759
        %761 = vadd.xlane.f32.xlu0 %v760
        %v762 = vpop.xlane.xlu0 %761
        %v763 = vlog2.pop %v762
        %v764 = vmul.f32 %v763, 0.6931472
        %v765 = vsub.f32 %v758, %v764
        %766 = vst [vmem:[%s400] sm:$0xff] %v765
        %767 = vst [vmem:[#allocation2] sm:$0xff] %v662
        %p768 = scmp.eq.s32.totalorder %s30, 7
        // Predicated region
        $region73: #{_rnn_forward_impl.1} parent=55 // pred_check
          %p769 = pneg %p768
        $region74: #{_rnn_forward_impl.1} parent=55 // pred_check_branch
          %771 = sbr.rel (%p769) target = $region76
        $region75: #{_rnn_forward_impl.1} parent=55 // pred_region
          %772 = vst [vmem:[#allocation11] sm:$0xff] %v662
        $region76: #{_rnn_forward_impl.1} parent=55 // pred_fallthru
          _
        %s773 = sand.u32 %s232, 1
        %s774 = scalar_lea.sflag [#allocation6], %s773
        %s775 = sand.u32 %s232, 1
        %s776 = smul.addr %s775, 8
        %s777 = scalar_lea.vmem [#allocation10], %s776
        // Predicated region
        $region77: #{_rnn_forward_impl.1} parent=55 // pred_check
          %p778 = pneg %p242
        $region78: #{_rnn_forward_impl.1} parent=55 // pred_check_branch
          %780 = sbr.rel (%p778) target = $region80
        $region79: #{_rnn_forward_impl.1} parent=55 // pred_region
          %s782 = ssub.s32 128, 128
          %783 = vsyncadd %s774, %s782
          %s784 = smul.addr %s30, 128
          %s785 = scalar_lea.hbm %s9, %s784
          %s787 = sshll.u32 %s777, 4
          %s788 = int_to_ptr.vmem [resolvable:$true] %s787
          %790 = dma.vmem_to_hbm [thread:$0]  %s788, 128, %s785, %s774
        $region80: #{_rnn_forward_impl.1} parent=55 // pred_fallthru
          _
        // Predicated region
        $region81: #{_rnn_forward_impl.1} parent=55 // pred_check
          %p791 = pneg %p263
        $region82: #{_rnn_forward_impl.1} parent=55 // pred_check_branch
          %793 = sbr.rel (%p791) target = $region84
        $region83: #{_rnn_forward_impl.1} parent=55 // pred_region
          %s795 = ssub.s32 128, 128
          %796 = vsyncadd [#allocation12], %s795
          %s798 = sshll.u32 [#allocation11], 4
          %s799 = int_to_ptr.vmem [resolvable:$true] %s798
          %801 = dma.vmem_to_hbm [thread:$0]  %s799, 128, %s10, [#allocation12]
        $region84: #{_rnn_forward_impl.1} parent=55 // pred_fallthru
          _
        // Predicated region
        $region85: #{_rnn_forward_impl.1} parent=55 // pred_check
          %p802 = pneg %p263
        $region86: #{_rnn_forward_impl.1} parent=55 // pred_check_branch
          %804 = sbr.rel (%p802) target = $region88
        $region87: #{_rnn_forward_impl.1} parent=55 // pred_region
          %805 = dma.done [#allocation12], 128
        $region88: #{_rnn_forward_impl.1} parent=55 // pred_fallthru
          _
      $region56: #{_rnn_forward_impl.1} parent=5 // pred_fallthru
        _
      %p806 = scmp.le.s32.totalorder 2, %s25
      // Predicated region
      $region89: #{_rnn_forward_impl.1} parent=5 // pred_check
        %p807 = pneg %p806
      $region90: #{_rnn_forward_impl.1} parent=5 // pred_check_branch
        %809 = sbr.rel (%p807) target = $region92
      $region91: #{_rnn_forward_impl.1} parent=5 // pred_region
        %s810 = ssub.s32 %s25, 2
        // Predicated region
        $region93: #{_rnn_forward_impl.1} parent=91 // pred_check
          %p811 = pneg %p248
        $region94: #{_rnn_forward_impl.1} parent=91 // pred_check_branch
          %813 = sbr.rel (%p811) target = $region96
        $region95: #{_rnn_forward_impl.1} parent=91 // pred_region
          %s814 = sand.u32 %s233, 1
          %s815 = scalar_lea.sflag [#allocation6], %s814
          %s816 = sand.u32 %s233, 1
          %s817 = smul.addr %s816, 8
          %s818 = scalar_lea.vmem [#allocation10], %s817
          %819 = dma.done %s815, 128
        $region96: #{_rnn_forward_impl.1} parent=91 // pred_fallthru
          _
      $region92: #{_rnn_forward_impl.1} parent=5 // pred_fallthru
        _
    $region6: #{_rnn_forward_impl.1} parent=1 // loop_footer
      %s29 = sadd.s32 1, %s25
    $region7: #{_rnn_forward_impl.1} parent=1 // loop_footer_branch
      %24 = sbr.rel target = $region3
    $region8: #{_rnn_forward_impl.1} parent=1 // loop_exit
      _
    %820 = vsyncpa [#allocation5], 1
    %s821 = scalar_lea.sflag [#allocation5], 1
    %822 = vsyncpa %s821, 1
    %823 = vsyncpa [#allocation8], 1
    %824 = vsyncpa [#allocation6], 1
    %s825 = scalar_lea.sflag [#allocation6], 1
    %826 = vsyncpa %s825, 1
    %827 = vsyncpa [#allocation12], 1

</llo_original>
